<compile_context>
chip_gen: v5e
topology: v5e:2x2
jax: 0.10.0
libtpu: 0.0.40
codegen_flags: <defaults>
</compile_context>

<pallas_src>
import math

import jax
import jax.numpy as jnp
from jax.experimental import pallas as pl
from jax.experimental.pallas import tpu as pltpu

_LANE = 128
_HIGH = jax.lax.Precision.HIGHEST


def _round_up(x, m):
    return ((x + m - 1) // m) * m


def _critic_kernel(x_ref, w1_ref, w2_ref, w3_ref, b1_ref, b2_ref, b3_ref, o_ref):
    # x_ref: (n_input, tb)   weights: (out_features, in_features)
    x = x_ref[...]
    # ---- layer 1 + ReLU ----
    h1 = jnp.dot(w1_ref[...], x,
                 preferred_element_type=jnp.float32, precision=_HIGH)
    h1 = jnp.maximum(h1 + b1_ref[...], 0.0)                # (n_hidden, tb)
    # ---- layer 2 + ReLU ----
    h2 = jnp.dot(w2_ref[...], h1,
                 preferred_element_type=jnp.float32, precision=_HIGH)
    h2 = jnp.maximum(h2 + b2_ref[...], 0.0)                # (n_hidden, tb)
    # ---- layer 3 + Tanh ----
    h3 = jnp.dot(w3_ref[...], h2,
                 preferred_element_type=jnp.float32, precision=_HIGH)
    # Lane-dense (n_out, tb) store: unmasked full-lane vst.
    o_ref[...] = jnp.tanh(h3 + b3_ref[...]).astype(o_ref.dtype)


def critic_forward(state, action, params, *, max_tile_b=2048):
    """Fused Critic forward.  params = (w1, w2, w3, b1, b2, b3) with
    weights in nn.Linear layout (out_features, in_features) and biases as
    (out_features, 1) columns.  Returns (batch, n_out)."""
    w1, w2, w3, b1, b2, b3 = params
    batch, state_dim = state.shape
    action_dim = action.shape[1]
    n_hidden, n_input = w1.shape
    n_out = w3.shape[0]
    assert n_input == state_dim + action_dim

    # Wrapper-side layout plumbing (cheap): concat + transpose to (n_input, B).
    x = jnp.concatenate([state, action], axis=1).T.astype(jnp.float32)

    # Pad the batch only to lane alignment, then derive the tile from it.
    padded_batch = _round_up(batch, _LANE)
    num_tiles = pl.cdiv(padded_batch, max_tile_b)
    if padded_batch >= 2 * _LANE:
        num_tiles = max(num_tiles, 2)   # >=2 parallel steps -> both v7x TCs
    tb = _round_up(pl.cdiv(padded_batch, num_tiles), _LANE)
    grid_n = pl.cdiv(padded_batch, tb)
    total = grid_n * tb
    if total != batch:
        x = jnp.pad(x, ((0, 0), (0, total - batch)))

    out = pl.pallas_call(
        _critic_kernel,
        out_shape=jax.ShapeDtypeStruct((n_out, total), jnp.float32),
        grid=(grid_n,),
        in_specs=[
            pl.BlockSpec((n_input, tb), lambda i: (0, i)),   # streamed activations
            pl.BlockSpec(w1.shape, lambda i: (0, 0)),        # VMEM-resident
            pl.BlockSpec(w2.shape, lambda i: (0, 0)),        # VMEM-resident
            pl.BlockSpec(w3.shape, lambda i: (0, 0)),        # VMEM-resident
            pl.BlockSpec(b1.shape, lambda i: (0, 0)),        # VMEM-resident
            pl.BlockSpec(b2.shape, lambda i: (0, 0)),        # VMEM-resident
            pl.BlockSpec(b3.shape, lambda i: (0, 0)),        # VMEM-resident
        ],
        out_specs=pl.BlockSpec((n_out, tb), lambda i: (0, i)),
        compiler_params=pltpu.CompilerParams(
            dimension_semantics=("parallel",)),
    )(x, w1, w2, w3, b1, b2, b3)

    # Back to (batch, n_out).
    return out[:, :batch].T


def init_critic_params(key, n_input, n_output, n_hidden):
    """Xavier-uniform (gain=1) weights, zero biases (matches weights_init_).

    Weights are stored exactly as nn.Linear.weight: (out_features, in_features).
    Biases are (out_features, 1) columns for the feature-major kernel layout.
    """
    def xavier(k, fan_in, fan_out):
        bound = math.sqrt(6.0 / (fan_in + fan_out))
        return jax.random.uniform(
            k, (fan_out, fan_in), minval=-bound, maxval=bound, dtype=jnp.float32)

    k1, k2, k3 = jax.random.split(key, 3)
    w1 = xavier(k1, n_input, n_hidden)     # (n_hidden, n_input)
    w2 = xavier(k2, n_hidden, n_hidden)    # (n_hidden, n_hidden)
    w3 = xavier(k3, n_hidden, n_output)    # (n_output, n_hidden)
    b1 = jnp.zeros((n_hidden, 1), jnp.float32)
    b2 = jnp.zeros((n_hidden, 1), jnp.float32)
    b3 = jnp.zeros((n_output, 1), jnp.float32)
    return (w1, w2, w3, b1, b2, b3)


def critic_reference(state, action, params):
    """Pure-JAX reference for correctness checking (f32, HIGHEST precision)."""
    w1, w2, w3, b1, b2, b3 = params
    x = jnp.concatenate([state, action], axis=1)
    h1 = jnp.maximum(jnp.dot(x, w1.T, precision=_HIGH) + b1[:, 0], 0.0)
    h2 = jnp.maximum(jnp.dot(h1, w2.T, precision=_HIGH) + b2[:, 0], 0.0)
    return jnp.tanh(jnp.dot(h2, w3.T, precision=_HIGH) + b3[:, 0])


if __name__ == "__main__":
    # DDPG critic shapes: state_dim=6, action_dim=2 -> n_input=8,
    # n_hidden=32, n_output=1.
    state_dim, action_dim, n_hidden, n_output = 6, 2, 32, 1
    n_input = state_dim + action_dim

    key = jax.random.PRNGKey(0)
    k_params, k_data, kb1, kb2, kb3 = jax.random.split(key, 5)

    w1, w2, w3, _, _, _ = init_critic_params(k_params, n_input, n_output, n_hidden)
    # Use nonzero biases in the test so the bias path is fully exercised
    # (PyTorch init zeroes them, but forward must handle any value).
    b1 = 0.1 * jax.random.normal(kb1, (n_hidden, 1), dtype=jnp.float32)
    b2 = 0.1 * jax.random.normal(kb2, (n_hidden, 1), dtype=jnp.float32)
    b3 = 0.1 * jax.random.normal(kb3, (n_output, 1), dtype=jnp.float32)
    params = (w1, w2, w3, b1, b2, b3)

    ok = True
    for batch in (8, 13):  # small + ragged batch (exercises lane padding)
        ks, ka = jax.random.split(jax.random.fold_in(k_data, batch))
        state = jax.random.normal(ks, (batch, state_dim), dtype=jnp.float32)
        action = jax.random.normal(ka, (batch, action_dim), dtype=jnp.float32)

        out = critic_forward(state, action, params)
        out = jax.block_until_ready(out)
        ref = critic_reference(state, action, params)

        ok &= out.shape == (batch, n_output)
        ok &= bool(jnp.allclose(out, ref, atol=1e-5, rtol=1e-5))

    assert ok, "mismatch vs JAX reference"
    print("KERNEL_OK")
</pallas_src>

<mosaic_0001>
module attributes {stable_mosaic.version = 11 : i64} {
  func.func @_critic_kernel(%arg0: i32, %arg1: memref<8x128xf32, #tpu.memory_space<vmem>>, %arg2: memref<32x8xf32, #tpu.memory_space<vmem>>, %arg3: memref<32x32xf32, #tpu.memory_space<vmem>>, %arg4: memref<1x32xf32, #tpu.memory_space<vmem>>, %arg5: memref<32x1xf32, #tpu.memory_space<vmem>>, %arg6: memref<32x1xf32, #tpu.memory_space<vmem>>, %arg7: memref<1x1xf32, #tpu.memory_space<vmem>>, %arg8: memref<1x128xf32, #tpu.memory_space<vmem>>) attributes {dimension_semantics = [#tpu.dimension_semantics<parallel>], iteration_bounds = array<i64: 1>, scalar_prefetch = 0 : i64, scratch_operands = 0 : i64, tpu.core_type = #tpu.core_type<tc>, window_params = [{transform_indices = @transform_0, window_bounds = array<i64: 8, 128>}, {pipeline_mode = #tpu.pipeline_mode<synchronous>, transform_indices = @transform_1, window_bounds = array<i64: 32, 8>}, {pipeline_mode = #tpu.pipeline_mode<synchronous>, transform_indices = @transform_2, window_bounds = array<i64: 32, 32>}, {pipeline_mode = #tpu.pipeline_mode<synchronous>, transform_indices = @transform_3, window_bounds = array<i64: 1, 32>}, {pipeline_mode = #tpu.pipeline_mode<synchronous>, transform_indices = @transform_4, window_bounds = array<i64: 32, 1>}, {pipeline_mode = #tpu.pipeline_mode<synchronous>, transform_indices = @transform_5, window_bounds = array<i64: 32, 1>}, {pipeline_mode = #tpu.pipeline_mode<synchronous>, transform_indices = @transform_6, window_bounds = array<i64: 1, 1>}, {transform_indices = @transform_7, window_bounds = array<i64: 1, 128>}]} {
    %c0 = arith.constant 0 : index
    %c0_0 = arith.constant 0 : index
    %0 = vector.load %arg1[%c0, %c0_0] : memref<8x128xf32, #tpu.memory_space<vmem>>, vector<8x128xf32>
    %c0_1 = arith.constant 0 : index
    %c0_2 = arith.constant 0 : index
    %1 = vector.load %arg2[%c0_1, %c0_2] : memref<32x8xf32, #tpu.memory_space<vmem>>, vector<32x8xf32>
    %cst = arith.constant dense<0.000000e+00> : vector<32x128xf32>
    %2 = tpu.matmul %1, %0, %cst {dimension_numbers = #tpu.dot_dimension_numbers<[1], [0], [0], [1], [0, 0, 1, 1], [], []>, precision = #tpu.contract_precision<fp32>} : vector<32x8xf32>, vector<8x128xf32>, vector<32x128xf32> -> vector<32x128xf32>
    %c0_3 = arith.constant 0 : index
    %c0_4 = arith.constant 0 : index
    %3 = vector.load %arg5[%c0_3, %c0_4] : memref<32x1xf32, #tpu.memory_space<vmem>>, vector<32x1xf32>
    %4 = vector.broadcast %3 : vector<32x1xf32> to vector<32x128xf32>
    %5 = arith.addf %2, %4 : vector<32x128xf32>
    %cst_5 = arith.constant 0.000000e+00 : f32
    %6 = vector.broadcast %cst_5 : f32 to vector<32x128xf32>
    %7 = arith.maximumf %5, %6 : vector<32x128xf32>
    %c0_6 = arith.constant 0 : index
    %c0_7 = arith.constant 0 : index
    %8 = vector.load %arg3[%c0_6, %c0_7] : memref<32x32xf32, #tpu.memory_space<vmem>>, vector<32x32xf32>
    %cst_8 = arith.constant dense<0.000000e+00> : vector<32x128xf32>
    %9 = tpu.matmul %8, %7, %cst_8 {dimension_numbers = #tpu.dot_dimension_numbers<[1], [0], [0], [1], [0, 0, 1, 1], [], []>, precision = #tpu.contract_precision<fp32>} : vector<32x32xf32>, vector<32x128xf32>, vector<32x128xf32> -> vector<32x128xf32>
    %c0_9 = arith.constant 0 : index
    %c0_10 = arith.constant 0 : index
    %10 = vector.load %arg6[%c0_9, %c0_10] : memref<32x1xf32, #tpu.memory_space<vmem>>, vector<32x1xf32>
    %11 = vector.broadcast %10 : vector<32x1xf32> to vector<32x128xf32>
    %12 = arith.addf %9, %11 : vector<32x128xf32>
    %cst_11 = arith.constant 0.000000e+00 : f32
    %13 = vector.broadcast %cst_11 : f32 to vector<32x128xf32>
    %14 = arith.maximumf %12, %13 : vector<32x128xf32>
    %c0_12 = arith.constant 0 : index
    %c0_13 = arith.constant 0 : index
    %15 = vector.load %arg4[%c0_12, %c0_13] : memref<1x32xf32, #tpu.memory_space<vmem>>, vector<1x32xf32>
    %cst_14 = arith.constant dense<0.000000e+00> : vector<1x128xf32>
    %16 = tpu.matmul %15, %14, %cst_14 {dimension_numbers = #tpu.dot_dimension_numbers<[1], [0], [0], [1], [0, 0, 1, 1], [], []>, precision = #tpu.contract_precision<fp32>} : vector<1x32xf32>, vector<32x128xf32>, vector<1x128xf32> -> vector<1x128xf32>
    %c0_15 = arith.constant 0 : index
    %c0_16 = arith.constant 0 : index
    %17 = vector.load %arg7[%c0_15, %c0_16] : memref<1x1xf32, #tpu.memory_space<vmem>>, vector<1x1xf32>
    %18 = vector.broadcast %17 : vector<1x1xf32> to vector<1x128xf32>
    %19 = arith.addf %16, %18 : vector<1x128xf32>
    %20 = math.tanh %19 : vector<1x128xf32>
    %c0_17 = arith.constant 0 : index
    %c0_18 = arith.constant 0 : index
    %21 = vector.load %arg8[%c0_17, %c0_18] : memref<1x128xf32, #tpu.memory_space<vmem>>, vector<1x128xf32>
    tpu.vector_store %arg8[%c0_17, %c0_18], %20 {strides = array<i32>} : memref<1x128xf32, #tpu.memory_space<vmem>>, vector<1x128xf32>,
    return
  }
  func.func @transform_0(%arg0: i32) -> (i32, i32) {
    %c0_i32 = arith.constant 0 : i32
    %c0_i32_0 = arith.constant 0 : i32
    return %c0_i32, %arg0 : i32, i32
  }
  func.func @transform_1(%arg0: i32) -> (i32, i32) {
    %c0_i32 = arith.constant 0 : i32
    %c0_i32_0 = arith.constant 0 : i32
    %c0_i32_1 = arith.constant 0 : i32
    return %c0_i32, %c0_i32_0 : i32, i32
  }
  func.func @transform_2(%arg0: i32) -> (i32, i32) {
    %c0_i32 = arith.constant 0 : i32
    %c0_i32_0 = arith.constant 0 : i32
    %c0_i32_1 = arith.constant 0 : i32
    return %c0_i32, %c0_i32_0 : i32, i32
  }
  func.func @transform_3(%arg0: i32) -> (i32, i32) {
    %c0_i32 = arith.constant 0 : i32
    %c0_i32_0 = arith.constant 0 : i32
    %c0_i32_1 = arith.constant 0 : i32
    return %c0_i32, %c0_i32_0 : i32, i32
  }
  func.func @transform_4(%arg0: i32) -> (i32, i32) {
    %c0_i32 = arith.constant 0 : i32
    %c0_i32_0 = arith.constant 0 : i32
    %c0_i32_1 = arith.constant 0 : i32
    return %c0_i32, %c0_i32_0 : i32, i32
  }
  func.func @transform_5(%arg0: i32) -> (i32, i32) {
    %c0_i32 = arith.constant 0 : i32
    %c0_i32_0 = arith.constant 0 : i32
    %c0_i32_1 = arith.constant 0 : i32
    return %c0_i32, %c0_i32_0 : i32, i32
  }
  func.func @transform_6(%arg0: i32) -> (i32, i32) {
    %c0_i32 = arith.constant 0 : i32
    %c0_i32_0 = arith.constant 0 : i32
    %c0_i32_1 = arith.constant 0 : i32
    return %c0_i32, %c0_i32_0 : i32, i32
  }
  func.func @transform_7(%arg0: i32) -> (i32, i32) {
    %c0_i32 = arith.constant 0 : i32
    %c0_i32_0 = arith.constant 0 : i32
    return %c0_i32, %arg0 : i32, i32
  }
}

</mosaic_0001>

<llo_original>
// kernel: tpu_custom_call.1
$region0: #{tpu_custom_call.1}
  #allocation0 [shape = 'u32[]', space=smem, size = 0x4, offset = 0x4, fixed_abs, tag = 'smem constant byte address 0x4 - core index']
  #allocation1 [shape = 'u32[72,128]{1,0:T(1,128)}', space=vmem, size = 0x9000, scoped, tag = 'internal scratch']
  #allocation2 [shape = 'f32[1,1]{1,0:T(1,128)S(1)}', space=vmem, size = 0x200, scoped, tag = 'scoped memory for tpu_custom_call.1']
  %s0 = inlined_call_operand.vmem [shape: f32[8,128], index: 0, kind: input, shape index: {}]
  %s1 = inlined_call_operand.vmem [shape: f32[32,8], index: 1, kind: input, shape index: {}]
  %s2 = inlined_call_operand.vmem [shape: f32[32,32], index: 2, kind: input, shape index: {}]
  %s3 = inlined_call_operand.vmem [shape: f32[1,32], index: 3, kind: input, shape index: {}]
  %s4 = inlined_call_operand.vmem [shape: f32[32,1], index: 4, kind: input, shape index: {}]
  %s5 = inlined_call_operand.vmem [shape: f32[32,1], index: 5, kind: input, shape index: {}]
  %s6 = inlined_call_operand.<no memory space> [shape: f32[1,1], index: 6, kind: input, shape index: {}]
  %s7 = inlined_call_operand.hbm [shape: f32[1,128], index: 7, kind: output, shape index: {}]
  %s8 = sld [smem:[#allocation0]]
  $region38: #{tpu_custom_call.1} parent=0
    _
  %s10 = ssub.s32 1, %s8
  %s11 = scalar_select 0, %s10, %s8
  %v12 = vstv %s6
  %13 = vst [vmem:[#allocation2] sm:$0x1] %v12
  $region1: #{tpu_custom_call.1} parent=0
    #allocation3 [shape = 'u8[512]{0}', space=vmem, size = 0x400, scoped, tag = 'output window, operand 0, single buffered']
    #allocation4 [shape = 's32[1]{0}', space=sflag, size = 0x4, scoped, tag = 'scoped memory for tpu_custom_call.1']
    %14 = vsyncpa [#allocation4], 0
    // Predicated region
    $region2: #{tpu_custom_call.1} parent=1 // pred_check
      _
    $region3: #{tpu_custom_call.1} parent=1 // pred_check_branch
      %16 = sbr.rel (0) target = $region5
    $region4: #{tpu_custom_call.1} parent=1 // pred_region
      _
    $region5: #{tpu_custom_call.1} parent=1 // pred_fallthru
      _
    // Predicated region
    $region6: #{tpu_custom_call.1} parent=1 // pred_check
      _
    $region7: #{tpu_custom_call.1} parent=1 // pred_check_branch
      %18 = sbr.rel (0) target = $region9
    $region8: #{tpu_custom_call.1} parent=1 // pred_region
      _
    $region9: #{tpu_custom_call.1} parent=1 // pred_fallthru
      _
    // Predicated region
    $region10: #{tpu_custom_call.1} parent=1 // pred_check
      _
    $region11: #{tpu_custom_call.1} parent=1 // pred_check_branch
      %20 = sbr.rel (0) target = $region13
    $region12: #{tpu_custom_call.1} parent=1 // pred_region
      _
    $region13: #{tpu_custom_call.1} parent=1 // pred_fallthru
      _
    // Predicated region
    $region14: #{tpu_custom_call.1} parent=1 // pred_check
      _
    $region15: #{tpu_custom_call.1} parent=1 // pred_check_branch
      %22 = sbr.rel (0) target = $region17
    $region16: #{tpu_custom_call.1} parent=1 // pred_region
      _
    $region17: #{tpu_custom_call.1} parent=1 // pred_fallthru
      _
    // Predicated region
    $region18: #{tpu_custom_call.1} parent=1 // pred_check
      _
    $region19: #{tpu_custom_call.1} parent=1 // pred_check_branch
      %24 = sbr.rel (0) target = $region21
    $region20: #{tpu_custom_call.1} parent=1 // pred_region
      _
    $region21: #{tpu_custom_call.1} parent=1 // pred_fallthru
      _
    // Predicated region
    $region22: #{tpu_custom_call.1} parent=1 // pred_check
      _
    $region23: #{tpu_custom_call.1} parent=1 // pred_check_branch
      %26 = sbr.rel (0) target = $region25
    $region24: #{tpu_custom_call.1} parent=1 // pred_region
      _
    $region25: #{tpu_custom_call.1} parent=1 // pred_fallthru
      _
    // Predicated region
    $region26: #{tpu_custom_call.1} parent=1 // pred_check
      _
    $region27: #{tpu_custom_call.1} parent=1 // pred_check_branch
      %28 = sbr.rel (0) target = $region29
    $region28: #{tpu_custom_call.1} parent=1 // pred_region
      _
    $region29: #{tpu_custom_call.1} parent=1 // pred_fallthru
      _
    %v29 = vld [vmem:[%s0] sm:$0xff]
    %v30 = vld [vmem:[%s1] sm:$0xff]
    %v31 = vld [vmem:[%s1 + $0x8] sm:$0xff]
    %v32 = vld [vmem:[%s1 + $0x10] sm:$0xff]
    %v33 = vld [vmem:[%s1 + $0x18] sm:$0xff]
    %v34 = vld [vmem:[%s4] sm:$0xff]
    %v35 = vld [vmem:[%s4 + $0x8] sm:$0xff]
    %v36 = vld [vmem:[%s4 + $0x10] sm:$0xff]
    %v37 = vld [vmem:[%s4 + $0x18] sm:$0xff]
    %39 = vset.pattern.permute.xlu0 0
    %40 = vperm.xlu0 %39, %v34
    %v41 = vpop.permute.xlu0 %40
    %44 = vset.pattern.permute.xlu0 0
    %45 = vperm.xlu0 %44, %v35
    %v46 = vpop.permute.xlu0 %45
    %49 = vset.pattern.permute.xlu0 0
    %50 = vperm.xlu0 %49, %v36
    %v51 = vpop.permute.xlu0 %50
    %54 = vset.pattern.permute.xlu0 0
    %55 = vperm.xlu0 %54, %v37
    %v56 = vpop.permute.xlu0 %55
    %vm58 = vcmask 64512
    %v60 = vsel %vm58, %v30, 0
    %v63 = vsel %vm58, %v31, 0
    %v66 = vsel %vm58, %v32, 0
    %v69 = vsel %vm58, %v33, 0
    %71 = vmatpush.msra.mxu0 0.0
    %72 = vmatpush.msra.mxu0 0.0
    %73 = vmatpush.msra.mxu0 0.0
    %74 = vmatpush.msra.mxu0 0.0
    %75 = vmatpush.msra.mxu0 0.0
    %76 = vmatpush.msra.mxu0 0.0
    %77 = vmatpush.msra.mxu0 0.0
    %78 = vmatpush.msra.mxu0 0.0
    %79 = vmatpush.msra.mxu0 0.0
    %80 = vmatpush.msra.mxu0 0.0
    %81 = vmatpush.msra.mxu0 0.0
    %82 = vmatpush.msra.mxu0 0.0
    %83 = vmatpush.msra.mxu0 0.0
    %84 = vmatpush.msra.mxu0 0.0
    %85 = vmatpush.msra.mxu0 0.0
    %v86 = vand.u32 %v29, 4294901760
    %87 = vmatpush.msra.mxu0 %v86
    %v88 = vand.u32 %v60, 4294901760
    %v89 = vsub.f32 %v60, %v88
    %v90 = vand.u32 %v89, 4294901760
    %v91 = vsub.f32 %v89, %v90
    %v92 = vand.u32 %v91, 4294901760
    %93 = vmatmul.f32.gmra.mxu0 %v92
    %v94 = vpop.f32.mrf.mxu0
    %v95 = vadd.f32 %v41, %v94
    %v96 = vand.u32 %v63, 4294901760
    %v97 = vsub.f32 %v63, %v96
    %v98 = vand.u32 %v97, 4294901760
    %v99 = vsub.f32 %v97, %v98
    %v100 = vand.u32 %v99, 4294901760
    %101 = vmatmul.f32.gmra.mxu0 %v100
    %v102 = vpop.f32.mrf.mxu0
    %v103 = vadd.f32 %v46, %v102
    %v104 = vand.u32 %v66, 4294901760
    %v105 = vsub.f32 %v66, %v104
    %v106 = vand.u32 %v105, 4294901760
    %v107 = vsub.f32 %v105, %v106
    %v108 = vand.u32 %v107, 4294901760
    %109 = vmatmul.f32.gmra.mxu0 %v108
    %v110 = vpop.f32.mrf.mxu0
    %v111 = vadd.f32 %v51, %v110
    %v112 = vand.u32 %v69, 4294901760
    %v113 = vsub.f32 %v69, %v112
    %v114 = vand.u32 %v113, 4294901760
    %v115 = vsub.f32 %v113, %v114
    %v116 = vand.u32 %v115, 4294901760
    %117 = vmatmul.f32.gmra.mxu0 %v116
    %v118 = vpop.f32.mrf.mxu0
    %v119 = vadd.f32 %v56, %v118
    %120 = vdwg.mxu0
    %121 = vmatpush.msra.mxu0 0.0
    %122 = vmatpush.msra.mxu0 0.0
    %123 = vmatpush.msra.mxu0 0.0
    %124 = vmatpush.msra.mxu0 0.0
    %125 = vmatpush.msra.mxu0 0.0
    %126 = vmatpush.msra.mxu0 0.0
    %127 = vmatpush.msra.mxu0 0.0
    %128 = vmatpush.msra.mxu0 0.0
    %129 = vmatpush.msra.mxu0 0.0
    %130 = vmatpush.msra.mxu0 0.0
    %131 = vmatpush.msra.mxu0 0.0
    %132 = vmatpush.msra.mxu0 0.0
    %133 = vmatpush.msra.mxu0 0.0
    %134 = vmatpush.msra.mxu0 0.0
    %135 = vmatpush.msra.mxu0 0.0
    %v136 = vand.u32 %v29, 4294901760
    %v137 = vsub.f32 %v29, %v136
    %v138 = vand.u32 %v137, 4294901760
    %v139 = vsub.f32 %v137, %v138
    %v140 = vand.u32 %v139, 4294901760
    %141 = vmatpush.msra.mxu0 %v140
    %v142 = vand.u32 %v60, 4294901760
    %143 = vmatmul.f32.gmra.mxu0 %v142
    %v144 = vpop.f32.mrf.mxu0
    %v145 = vadd.f32 %v95, %v144
    %v146 = vand.u32 %v63, 4294901760
    %147 = vmatmul.f32.gmra.mxu0 %v146
    %v148 = vpop.f32.mrf.mxu0
    %v149 = vadd.f32 %v103, %v148
    %v150 = vand.u32 %v66, 4294901760
    %151 = vmatmul.f32.gmra.mxu0 %v150
    %v152 = vpop.f32.mrf.mxu0
    %v153 = vadd.f32 %v111, %v152
    %v154 = vand.u32 %v69, 4294901760
    %155 = vmatmul.f32.gmra.mxu0 %v154
    %v156 = vpop.f32.mrf.mxu0
    %v157 = vadd.f32 %v119, %v156
    %158 = vdwg.mxu0
    %159 = vmatpush.msra.mxu0 0.0
    %160 = vmatpush.msra.mxu0 0.0
    %161 = vmatpush.msra.mxu0 0.0
    %162 = vmatpush.msra.mxu0 0.0
    %163 = vmatpush.msra.mxu0 0.0
    %164 = vmatpush.msra.mxu0 0.0
    %165 = vmatpush.msra.mxu0 0.0
    %166 = vmatpush.msra.mxu0 0.0
    %167 = vmatpush.msra.mxu0 0.0
    %168 = vmatpush.msra.mxu0 0.0
    %169 = vmatpush.msra.mxu0 0.0
    %170 = vmatpush.msra.mxu0 0.0
    %171 = vmatpush.msra.mxu0 0.0
    %172 = vmatpush.msra.mxu0 0.0
    %173 = vmatpush.msra.mxu0 0.0
    %v174 = vand.u32 %v29, 4294901760
    %v175 = vsub.f32 %v29, %v174
    %176 = vmatpush.msra.mxu0 %v175
    %v177 = vand.u32 %v60, 4294901760
    %v178 = vsub.f32 %v60, %v177
    %179 = vmatmul.f32.gmra.mxu0 %v178
    %v180 = vpop.f32.mrf.mxu0
    %v181 = vadd.f32 %v145, %v180
    %v182 = vand.u32 %v63, 4294901760
    %v183 = vsub.f32 %v63, %v182
    %184 = vmatmul.f32.gmra.mxu0 %v183
    %v185 = vpop.f32.mrf.mxu0
    %v186 = vadd.f32 %v149, %v185
    %v187 = vand.u32 %v66, 4294901760
    %v188 = vsub.f32 %v66, %v187
    %189 = vmatmul.f32.gmra.mxu0 %v188
    %v190 = vpop.f32.mrf.mxu0
    %v191 = vadd.f32 %v153, %v190
    %v192 = vand.u32 %v69, 4294901760
    %v193 = vsub.f32 %v69, %v192
    %194 = vmatmul.f32.gmra.mxu0 %v193
    %v195 = vpop.f32.mrf.mxu0
    %v196 = vadd.f32 %v157, %v195
    %197 = vdwg.mxu0
    %198 = vmatpush.msra.mxu0 0.0
    %199 = vmatpush.msra.mxu0 0.0
    %200 = vmatpush.msra.mxu0 0.0
    %201 = vmatpush.msra.mxu0 0.0
    %202 = vmatpush.msra.mxu0 0.0
    %203 = vmatpush.msra.mxu0 0.0
    %204 = vmatpush.msra.mxu0 0.0
    %205 = vmatpush.msra.mxu0 0.0
    %206 = vmatpush.msra.mxu0 0.0
    %207 = vmatpush.msra.mxu0 0.0
    %208 = vmatpush.msra.mxu0 0.0
    %209 = vmatpush.msra.mxu0 0.0
    %210 = vmatpush.msra.mxu0 0.0
    %211 = vmatpush.msra.mxu0 0.0
    %212 = vmatpush.msra.mxu0 0.0
    %v213 = vand.u32 %v29, 4294901760
    %214 = vmatpush.msra.mxu0 %v213
    %v215 = vand.u32 %v60, 4294901760
    %v216 = vsub.f32 %v60, %v215
    %v217 = vand.u32 %v216, 4294901760
    %218 = vmatmul.f32.gmra.mxu0 %v217
    %v219 = vpop.f32.mrf.mxu0
    %v220 = vadd.f32 %v181, %v219
    %v221 = vand.u32 %v63, 4294901760
    %v222 = vsub.f32 %v63, %v221
    %v223 = vand.u32 %v222, 4294901760
    %224 = vmatmul.f32.gmra.mxu0 %v223
    %v225 = vpop.f32.mrf.mxu0
    %v226 = vadd.f32 %v186, %v225
    %v227 = vand.u32 %v66, 4294901760
    %v228 = vsub.f32 %v66, %v227
    %v229 = vand.u32 %v228, 4294901760
    %230 = vmatmul.f32.gmra.mxu0 %v229
    %v231 = vpop.f32.mrf.mxu0
    %v232 = vadd.f32 %v191, %v231
    %v233 = vand.u32 %v69, 4294901760
    %v234 = vsub.f32 %v69, %v233
    %v235 = vand.u32 %v234, 4294901760
    %236 = vmatmul.f32.gmra.mxu0 %v235
    %v237 = vpop.f32.mrf.mxu0
    %v238 = vadd.f32 %v196, %v237
    %239 = vdwg.mxu0
    %240 = vmatpush.msra.mxu0 0.0
    %241 = vmatpush.msra.mxu0 0.0
    %242 = vmatpush.msra.mxu0 0.0
    %243 = vmatpush.msra.mxu0 0.0
    %244 = vmatpush.msra.mxu0 0.0
    %245 = vmatpush.msra.mxu0 0.0
    %246 = vmatpush.msra.mxu0 0.0
    %247 = vmatpush.msra.mxu0 0.0
    %248 = vmatpush.msra.mxu0 0.0
    %249 = vmatpush.msra.mxu0 0.0
    %250 = vmatpush.msra.mxu0 0.0
    %251 = vmatpush.msra.mxu0 0.0
    %252 = vmatpush.msra.mxu0 0.0
    %253 = vmatpush.msra.mxu0 0.0
    %254 = vmatpush.msra.mxu0 0.0
    %v255 = vand.u32 %v29, 4294901760
    %v256 = vsub.f32 %v29, %v255
    %v257 = vand.u32 %v256, 4294901760
    %258 = vmatpush.msra.mxu0 %v257
    %v259 = vand.u32 %v60, 4294901760
    %260 = vmatmul.f32.gmra.mxu0 %v259
    %v261 = vpop.f32.mrf.mxu0
    %v262 = vadd.f32 %v220, %v261
    %v263 = vand.u32 %v63, 4294901760
    %264 = vmatmul.f32.gmra.mxu0 %v263
    %v265 = vpop.f32.mrf.mxu0
    %v266 = vadd.f32 %v226, %v265
    %v267 = vand.u32 %v66, 4294901760
    %268 = vmatmul.f32.gmra.mxu0 %v267
    %v269 = vpop.f32.mrf.mxu0
    %v270 = vadd.f32 %v232, %v269
    %v271 = vand.u32 %v69, 4294901760
    %272 = vmatmul.f32.gmra.mxu0 %v271
    %v273 = vpop.f32.mrf.mxu0
    %v274 = vadd.f32 %v238, %v273
    %275 = vdwg.mxu0
    %276 = vmatpush.msra.mxu0 0.0
    %277 = vmatpush.msra.mxu0 0.0
    %278 = vmatpush.msra.mxu0 0.0
    %279 = vmatpush.msra.mxu0 0.0
    %280 = vmatpush.msra.mxu0 0.0
    %281 = vmatpush.msra.mxu0 0.0
    %282 = vmatpush.msra.mxu0 0.0
    %283 = vmatpush.msra.mxu0 0.0
    %284 = vmatpush.msra.mxu0 0.0
    %285 = vmatpush.msra.mxu0 0.0
    %286 = vmatpush.msra.mxu0 0.0
    %287 = vmatpush.msra.mxu0 0.0
    %288 = vmatpush.msra.mxu0 0.0
    %289 = vmatpush.msra.mxu0 0.0
    %290 = vmatpush.msra.mxu0 0.0
    %v291 = vand.u32 %v29, 4294901760
    %292 = vmatpush.msra.mxu0 %v291
    %v293 = vand.u32 %v60, 4294901760
    %294 = vmatmul.f32.gmra.mxu0 %v293
    %v295 = vpop.f32.mrf.mxu0
    %v296 = vadd.f32 %v262, %v295
    %v297 = vand.u32 %v63, 4294901760
    %298 = vmatmul.f32.gmra.mxu0 %v297
    %v299 = vpop.f32.mrf.mxu0
    %v300 = vadd.f32 %v266, %v299
    %v301 = vand.u32 %v66, 4294901760
    %302 = vmatmul.f32.gmra.mxu0 %v301
    %v303 = vpop.f32.mrf.mxu0
    %v304 = vadd.f32 %v270, %v303
    %v305 = vand.u32 %v69, 4294901760
    %306 = vmatmul.f32.gmra.mxu0 %v305
    %v307 = vpop.f32.mrf.mxu0
    %v308 = vadd.f32 %v274, %v307
    %309 = vdwg.mxu0
    %v310 = vmax.f32 %v296, 0.0
    %v311 = vmax.f32 %v300, 0.0
    %v312 = vmax.f32 %v304, 0.0
    %v313 = vmax.f32 %v308, 0.0
    %v314 = vld [vmem:[%s2] sm:$0xff]
    %v315 = vld [vmem:[%s2 + $0x8] sm:$0xff]
    %v316 = vld [vmem:[%s2 + $0x10] sm:$0xff]
    %v317 = vld [vmem:[%s2 + $0x18] sm:$0xff]
    %v318 = vld [vmem:[%s5] sm:$0xff]
    %v319 = vld [vmem:[%s5 + $0x8] sm:$0xff]
    %v320 = vld [vmem:[%s5 + $0x10] sm:$0xff]
    %v321 = vld [vmem:[%s5 + $0x18] sm:$0xff]
    %323 = vset.pattern.permute.xlu0 0
    %324 = vperm.xlu0 %323, %v318
    %v325 = vpop.permute.xlu0 %324
    %328 = vset.pattern.permute.xlu0 0
    %329 = vperm.xlu0 %328, %v319
    %v330 = vpop.permute.xlu0 %329
    %333 = vset.pattern.permute.xlu0 0
    %334 = vperm.xlu0 %333, %v320
    %v335 = vpop.permute.xlu0 %334
    %338 = vset.pattern.permute.xlu0 0
    %339 = vperm.xlu0 %338, %v321
    %v340 = vpop.permute.xlu0 %339
    %vm342 = vcmask 261120
    %v344 = vsel %vm342, %v314, 0
    %v347 = vsel %vm342, %v315, 0
    %v350 = vsel %vm342, %v316, 0
    %v353 = vsel %vm342, %v317, 0
    %355 = vmatpush.msra.mxu0 0.0
    %356 = vmatpush.msra.mxu0 0.0
    %357 = vmatpush.msra.mxu0 0.0
    %358 = vmatpush.msra.mxu0 0.0
    %359 = vmatpush.msra.mxu0 0.0
    %360 = vmatpush.msra.mxu0 0.0
    %361 = vmatpush.msra.mxu0 0.0
    %362 = vmatpush.msra.mxu0 0.0
    %363 = vmatpush.msra.mxu0 0.0
    %364 = vmatpush.msra.mxu0 0.0
    %365 = vmatpush.msra.mxu0 0.0
    %366 = vmatpush.msra.mxu0 0.0
    %v367 = vand.u32 %v313, 4294901760
    %368 = vmatpush.msra.mxu0 %v367
    %v369 = vand.u32 %v312, 4294901760
    %370 = vmatpush.msra.mxu0 %v369
    %v371 = vand.u32 %v311, 4294901760
    %372 = vmatpush.msra.mxu0 %v371
    %v373 = vand.u32 %v310, 4294901760
    %374 = vmatpush.msra.mxu0 %v373
    %v375 = vand.u32 %v344, 4294901760
    %v376 = vsub.f32 %v344, %v375
    %v377 = vand.u32 %v376, 4294901760
    %v378 = vsub.f32 %v376, %v377
    %v379 = vand.u32 %v378, 4294901760
    %380 = vmatmul.f32.gmra.mxu0 %v379
    %v381 = vpop.f32.mrf.mxu0
    %v382 = vadd.f32 %v325, %v381
    %v383 = vand.u32 %v347, 4294901760
    %v384 = vsub.f32 %v347, %v383
    %v385 = vand.u32 %v384, 4294901760
    %v386 = vsub.f32 %v384, %v385
    %v387 = vand.u32 %v386, 4294901760
    %388 = vmatmul.f32.gmra.mxu0 %v387
    %v389 = vpop.f32.mrf.mxu0
    %v390 = vadd.f32 %v330, %v389
    %v391 = vand.u32 %v350, 4294901760
    %v392 = vsub.f32 %v350, %v391
    %v393 = vand.u32 %v392, 4294901760
    %v394 = vsub.f32 %v392, %v393
    %v395 = vand.u32 %v394, 4294901760
    %396 = vmatmul.f32.gmra.mxu0 %v395
    %v397 = vpop.f32.mrf.mxu0
    %v398 = vadd.f32 %v335, %v397
    %v399 = vand.u32 %v353, 4294901760
    %v400 = vsub.f32 %v353, %v399
    %v401 = vand.u32 %v400, 4294901760
    %v402 = vsub.f32 %v400, %v401
    %v403 = vand.u32 %v402, 4294901760
    %404 = vmatmul.f32.gmra.mxu0 %v403
    %v405 = vpop.f32.mrf.mxu0
    %v406 = vadd.f32 %v340, %v405
    %407 = vdwg.mxu0
    %408 = vmatpush.msra.mxu0 0.0
    %409 = vmatpush.msra.mxu0 0.0
    %410 = vmatpush.msra.mxu0 0.0
    %411 = vmatpush.msra.mxu0 0.0
    %412 = vmatpush.msra.mxu0 0.0
    %413 = vmatpush.msra.mxu0 0.0
    %414 = vmatpush.msra.mxu0 0.0
    %415 = vmatpush.msra.mxu0 0.0
    %416 = vmatpush.msra.mxu0 0.0
    %417 = vmatpush.msra.mxu0 0.0
    %418 = vmatpush.msra.mxu0 0.0
    %419 = vmatpush.msra.mxu0 0.0
    %v420 = vand.u32 %v313, 4294901760
    %v421 = vsub.f32 %v313, %v420
    %v422 = vand.u32 %v421, 4294901760
    %v423 = vsub.f32 %v421, %v422
    %v424 = vand.u32 %v423, 4294901760
    %425 = vmatpush.msra.mxu0 %v424
    %v426 = vand.u32 %v312, 4294901760
    %v427 = vsub.f32 %v312, %v426
    %v428 = vand.u32 %v427, 4294901760
    %v429 = vsub.f32 %v427, %v428
    %v430 = vand.u32 %v429, 4294901760
    %431 = vmatpush.msra.mxu0 %v430
    %v432 = vand.u32 %v311, 4294901760
    %v433 = vsub.f32 %v311, %v432
    %v434 = vand.u32 %v433, 4294901760
    %v435 = vsub.f32 %v433, %v434
    %v436 = vand.u32 %v435, 4294901760
    %437 = vmatpush.msra.mxu0 %v436
    %v438 = vand.u32 %v310, 4294901760
    %v439 = vsub.f32 %v310, %v438
    %v440 = vand.u32 %v439, 4294901760
    %v441 = vsub.f32 %v439, %v440
    %v442 = vand.u32 %v441, 4294901760
    %443 = vmatpush.msra.mxu0 %v442
    %v444 = vand.u32 %v344, 4294901760
    %445 = vmatmul.f32.gmra.mxu0 %v444
    %v446 = vpop.f32.mrf.mxu0
    %v447 = vadd.f32 %v382, %v446
    %v448 = vand.u32 %v347, 4294901760
    %449 = vmatmul.f32.gmra.mxu0 %v448
    %v450 = vpop.f32.mrf.mxu0
    %v451 = vadd.f32 %v390, %v450
    %v452 = vand.u32 %v350, 4294901760
    %453 = vmatmul.f32.gmra.mxu0 %v452
    %v454 = vpop.f32.mrf.mxu0
    %v455 = vadd.f32 %v398, %v454
    %v456 = vand.u32 %v353, 4294901760
    %457 = vmatmul.f32.gmra.mxu0 %v456
    %v458 = vpop.f32.mrf.mxu0
    %v459 = vadd.f32 %v406, %v458
    %460 = vdwg.mxu0
    %461 = vmatpush.msra.mxu0 0.0
    %462 = vmatpush.msra.mxu0 0.0
    %463 = vmatpush.msra.mxu0 0.0
    %464 = vmatpush.msra.mxu0 0.0
    %465 = vmatpush.msra.mxu0 0.0
    %466 = vmatpush.msra.mxu0 0.0
    %467 = vmatpush.msra.mxu0 0.0
    %468 = vmatpush.msra.mxu0 0.0
    %469 = vmatpush.msra.mxu0 0.0
    %470 = vmatpush.msra.mxu0 0.0
    %471 = vmatpush.msra.mxu0 0.0
    %472 = vmatpush.msra.mxu0 0.0
    %v473 = vand.u32 %v313, 4294901760
    %v474 = vsub.f32 %v313, %v473
    %475 = vmatpush.msra.mxu0 %v474
    %v476 = vand.u32 %v312, 4294901760
    %v477 = vsub.f32 %v312, %v476
    %478 = vmatpush.msra.mxu0 %v477
    %v479 = vand.u32 %v311, 4294901760
    %v480 = vsub.f32 %v311, %v479
    %481 = vmatpush.msra.mxu0 %v480
    %v482 = vand.u32 %v310, 4294901760
    %v483 = vsub.f32 %v310, %v482
    %484 = vmatpush.msra.mxu0 %v483
    %v485 = vand.u32 %v344, 4294901760
    %v486 = vsub.f32 %v344, %v485
    %487 = vmatmul.f32.gmra.mxu0 %v486
    %v488 = vpop.f32.mrf.mxu0
    %v489 = vadd.f32 %v447, %v488
    %v490 = vand.u32 %v347, 4294901760
    %v491 = vsub.f32 %v347, %v490
    %492 = vmatmul.f32.gmra.mxu0 %v491
    %v493 = vpop.f32.mrf.mxu0
    %v494 = vadd.f32 %v451, %v493
    %v495 = vand.u32 %v350, 4294901760
    %v496 = vsub.f32 %v350, %v495
    %497 = vmatmul.f32.gmra.mxu0 %v496
    %v498 = vpop.f32.mrf.mxu0
    %v499 = vadd.f32 %v455, %v498
    %v500 = vand.u32 %v353, 4294901760
    %v501 = vsub.f32 %v353, %v500
    %502 = vmatmul.f32.gmra.mxu0 %v501
    %v503 = vpop.f32.mrf.mxu0
    %v504 = vadd.f32 %v459, %v503
    %505 = vdwg.mxu0
    %506 = vmatpush.msra.mxu0 0.0
    %507 = vmatpush.msra.mxu0 0.0
    %508 = vmatpush.msra.mxu0 0.0
    %509 = vmatpush.msra.mxu0 0.0
    %510 = vmatpush.msra.mxu0 0.0
    %511 = vmatpush.msra.mxu0 0.0
    %512 = vmatpush.msra.mxu0 0.0
    %513 = vmatpush.msra.mxu0 0.0
    %514 = vmatpush.msra.mxu0 0.0
    %515 = vmatpush.msra.mxu0 0.0
    %516 = vmatpush.msra.mxu0 0.0
    %517 = vmatpush.msra.mxu0 0.0
    %v518 = vand.u32 %v313, 4294901760
    %519 = vmatpush.msra.mxu0 %v518
    %v520 = vand.u32 %v312, 4294901760
    %521 = vmatpush.msra.mxu0 %v520
    %v522 = vand.u32 %v311, 4294901760
    %523 = vmatpush.msra.mxu0 %v522
    %v524 = vand.u32 %v310, 4294901760
    %525 = vmatpush.msra.mxu0 %v524
    %v526 = vand.u32 %v344, 4294901760
    %v527 = vsub.f32 %v344, %v526
    %v528 = vand.u32 %v527, 4294901760
    %529 = vmatmul.f32.gmra.mxu0 %v528
    %v530 = vpop.f32.mrf.mxu0
    %v531 = vadd.f32 %v489, %v530
    %v532 = vand.u32 %v347, 4294901760
    %v533 = vsub.f32 %v347, %v532
    %v534 = vand.u32 %v533, 4294901760
    %535 = vmatmul.f32.gmra.mxu0 %v534
    %v536 = vpop.f32.mrf.mxu0
    %v537 = vadd.f32 %v494, %v536
    %v538 = vand.u32 %v350, 4294901760
    %v539 = vsub.f32 %v350, %v538
    %v540 = vand.u32 %v539, 4294901760
    %541 = vmatmul.f32.gmra.mxu0 %v540
    %v542 = vpop.f32.mrf.mxu0
    %v543 = vadd.f32 %v499, %v542
    %v544 = vand.u32 %v353, 4294901760
    %v545 = vsub.f32 %v353, %v544
    %v546 = vand.u32 %v545, 4294901760
    %547 = vmatmul.f32.gmra.mxu0 %v546
    %v548 = vpop.f32.mrf.mxu0
    %v549 = vadd.f32 %v504, %v548
    %550 = vdwg.mxu0
    %551 = vmatpush.msra.mxu0 0.0
    %552 = vmatpush.msra.mxu0 0.0
    %553 = vmatpush.msra.mxu0 0.0
    %554 = vmatpush.msra.mxu0 0.0
    %555 = vmatpush.msra.mxu0 0.0
    %556 = vmatpush.msra.mxu0 0.0
    %557 = vmatpush.msra.mxu0 0.0
    %558 = vmatpush.msra.mxu0 0.0
    %559 = vmatpush.msra.mxu0 0.0
    %560 = vmatpush.msra.mxu0 0.0
    %561 = vmatpush.msra.mxu0 0.0
    %562 = vmatpush.msra.mxu0 0.0
    %v563 = vand.u32 %v313, 4294901760
    %v564 = vsub.f32 %v313, %v563
    %v565 = vand.u32 %v564, 4294901760
    %566 = vmatpush.msra.mxu0 %v565
    %v567 = vand.u32 %v312, 4294901760
    %v568 = vsub.f32 %v312, %v567
    %v569 = vand.u32 %v568, 4294901760
    %570 = vmatpush.msra.mxu0 %v569
    %v571 = vand.u32 %v311, 4294901760
    %v572 = vsub.f32 %v311, %v571
    %v573 = vand.u32 %v572, 4294901760
    %574 = vmatpush.msra.mxu0 %v573
    %v575 = vand.u32 %v310, 4294901760
    %v576 = vsub.f32 %v310, %v575
    %v577 = vand.u32 %v576, 4294901760
    %578 = vmatpush.msra.mxu0 %v577
    %v579 = vand.u32 %v344, 4294901760
    %580 = vmatmul.f32.gmra.mxu0 %v579
    %v581 = vpop.f32.mrf.mxu0
    %v582 = vadd.f32 %v531, %v581
    %v583 = vand.u32 %v347, 4294901760
    %584 = vmatmul.f32.gmra.mxu0 %v583
    %v585 = vpop.f32.mrf.mxu0
    %v586 = vadd.f32 %v537, %v585
    %v587 = vand.u32 %v350, 4294901760
    %588 = vmatmul.f32.gmra.mxu0 %v587
    %v589 = vpop.f32.mrf.mxu0
    %v590 = vadd.f32 %v543, %v589
    %v591 = vand.u32 %v353, 4294901760
    %592 = vmatmul.f32.gmra.mxu0 %v591
    %v593 = vpop.f32.mrf.mxu0
    %v594 = vadd.f32 %v549, %v593
    %595 = vdwg.mxu0
    %596 = vmatpush.msra.mxu0 0.0
    %597 = vmatpush.msra.mxu0 0.0
    %598 = vmatpush.msra.mxu0 0.0
    %599 = vmatpush.msra.mxu0 0.0
    %600 = vmatpush.msra.mxu0 0.0
    %601 = vmatpush.msra.mxu0 0.0
    %602 = vmatpush.msra.mxu0 0.0
    %603 = vmatpush.msra.mxu0 0.0
    %604 = vmatpush.msra.mxu0 0.0
    %605 = vmatpush.msra.mxu0 0.0
    %606 = vmatpush.msra.mxu0 0.0
    %607 = vmatpush.msra.mxu0 0.0
    %v608 = vand.u32 %v313, 4294901760
    %609 = vmatpush.msra.mxu0 %v608
    %v610 = vand.u32 %v312, 4294901760
    %611 = vmatpush.msra.mxu0 %v610
    %v612 = vand.u32 %v311, 4294901760
    %613 = vmatpush.msra.mxu0 %v612
    %v614 = vand.u32 %v310, 4294901760
    %615 = vmatpush.msra.mxu0 %v614
    %v616 = vand.u32 %v344, 4294901760
    %617 = vmatmul.f32.gmra.mxu0 %v616
    %v618 = vpop.f32.mrf.mxu0
    %v619 = vadd.f32 %v582, %v618
    %v620 = vand.u32 %v347, 4294901760
    %621 = vmatmul.f32.gmra.mxu0 %v620
    %v622 = vpop.f32.mrf.mxu0
    %v623 = vadd.f32 %v586, %v622
    %v624 = vand.u32 %v350, 4294901760
    %625 = vmatmul.f32.gmra.mxu0 %v624
    %v626 = vpop.f32.mrf.mxu0
    %v627 = vadd.f32 %v590, %v626
    %v628 = vand.u32 %v353, 4294901760
    %629 = vmatmul.f32.gmra.mxu0 %v628
    %v630 = vpop.f32.mrf.mxu0
    %v631 = vadd.f32 %v594, %v630
    %632 = vdwg.mxu0
    %v633 = vmax.f32 %v619, 0.0
    %v634 = vmax.f32 %v623, 0.0
    %v635 = vmax.f32 %v627, 0.0
    %v636 = vmax.f32 %v631, 0.0
    %v637 = vld [vmem:[%s3] sm:$0x1]
    %v638 = vld [vmem:[#allocation2] sm:$0x1]
    %640 = vset.pattern.permute.xlu0 0
    %641 = vperm.xlu0 %640, %v638
    %v642 = vpop.permute.xlu0 %641
    %v644 = vperm.slane %v642, 0
    %v646 = vsel %vm342, %v637, 0
    %648 = vmatpush.msra.mxu0 0.0
    %649 = vmatpush.msra.mxu0 0.0
    %650 = vmatpush.msra.mxu0 0.0
    %651 = vmatpush.msra.mxu0 0.0
    %652 = vmatpush.msra.mxu0 0.0
    %653 = vmatpush.msra.mxu0 0.0
    %654 = vmatpush.msra.mxu0 0.0
    %655 = vmatpush.msra.mxu0 0.0
    %656 = vmatpush.msra.mxu0 0.0
    %657 = vmatpush.msra.mxu0 0.0
    %658 = vmatpush.msra.mxu0 0.0
    %659 = vmatpush.msra.mxu0 0.0
    %v660 = vand.u32 %v636, 4294901760
    %661 = vmatpush.msra.mxu0 %v660
    %v662 = vand.u32 %v635, 4294901760
    %663 = vmatpush.msra.mxu0 %v662
    %v664 = vand.u32 %v634, 4294901760
    %665 = vmatpush.msra.mxu0 %v664
    %v666 = vand.u32 %v633, 4294901760
    %667 = vmatpush.msra.mxu0 %v666
    %v668 = vand.u32 %v646, 4294901760
    %v669 = vsub.f32 %v646, %v668
    %v670 = vand.u32 %v669, 4294901760
    %v671 = vsub.f32 %v669, %v670
    %v672 = vand.u32 %v671, 4294901760
    %673 = vmatmul.f32.gmra.mxu0 %v672
    %v674 = vpop.f32.mrf.mxu0
    %v675 = vadd.f32 %v644, %v674
    %676 = vdwg.mxu0
    %677 = vmatpush.msra.mxu0 0.0
    %678 = vmatpush.msra.mxu0 0.0
    %679 = vmatpush.msra.mxu0 0.0
    %680 = vmatpush.msra.mxu0 0.0
    %681 = vmatpush.msra.mxu0 0.0
    %682 = vmatpush.msra.mxu0 0.0
    %683 = vmatpush.msra.mxu0 0.0
    %684 = vmatpush.msra.mxu0 0.0
    %685 = vmatpush.msra.mxu0 0.0
    %686 = vmatpush.msra.mxu0 0.0
    %687 = vmatpush.msra.mxu0 0.0
    %688 = vmatpush.msra.mxu0 0.0
    %v689 = vand.u32 %v636, 4294901760
    %v690 = vsub.f32 %v636, %v689
    %v691 = vand.u32 %v690, 4294901760
    %v692 = vsub.f32 %v690, %v691
    %v693 = vand.u32 %v692, 4294901760
    %694 = vmatpush.msra.mxu0 %v693
    %v695 = vand.u32 %v635, 4294901760
    %v696 = vsub.f32 %v635, %v695
    %v697 = vand.u32 %v696, 4294901760
    %v698 = vsub.f32 %v696, %v697
    %v699 = vand.u32 %v698, 4294901760
    %700 = vmatpush.msra.mxu0 %v699
    %v701 = vand.u32 %v634, 4294901760
    %v702 = vsub.f32 %v634, %v701
    %v703 = vand.u32 %v702, 4294901760
    %v704 = vsub.f32 %v702, %v703
    %v705 = vand.u32 %v704, 4294901760
    %706 = vmatpush.msra.mxu0 %v705
    %v707 = vand.u32 %v633, 4294901760
    %v708 = vsub.f32 %v633, %v707
    %v709 = vand.u32 %v708, 4294901760
    %v710 = vsub.f32 %v708, %v709
    %v711 = vand.u32 %v710, 4294901760
    %712 = vmatpush.msra.mxu0 %v711
    %v713 = vand.u32 %v646, 4294901760
    %714 = vmatmul.f32.gmra.mxu0 %v713
    %v715 = vpop.f32.mrf.mxu0
    %v716 = vadd.f32 %v675, %v715
    %717 = vdwg.mxu0
    %718 = vmatpush.msra.mxu0 0.0
    %719 = vmatpush.msra.mxu0 0.0
    %720 = vmatpush.msra.mxu0 0.0
    %721 = vmatpush.msra.mxu0 0.0
    %722 = vmatpush.msra.mxu0 0.0
    %723 = vmatpush.msra.mxu0 0.0
    %724 = vmatpush.msra.mxu0 0.0
    %725 = vmatpush.msra.mxu0 0.0
    %726 = vmatpush.msra.mxu0 0.0
    %727 = vmatpush.msra.mxu0 0.0
    %728 = vmatpush.msra.mxu0 0.0
    %729 = vmatpush.msra.mxu0 0.0
    %v730 = vand.u32 %v636, 4294901760
    %v731 = vsub.f32 %v636, %v730
    %732 = vmatpush.msra.mxu0 %v731
    %v733 = vand.u32 %v635, 4294901760
    %v734 = vsub.f32 %v635, %v733
    %735 = vmatpush.msra.mxu0 %v734
    %v736 = vand.u32 %v634, 4294901760
    %v737 = vsub.f32 %v634, %v736
    %738 = vmatpush.msra.mxu0 %v737
    %v739 = vand.u32 %v633, 4294901760
    %v740 = vsub.f32 %v633, %v739
    %741 = vmatpush.msra.mxu0 %v740
    %v742 = vand.u32 %v646, 4294901760
    %v743 = vsub.f32 %v646, %v742
    %744 = vmatmul.f32.gmra.mxu0 %v743
    %v745 = vpop.f32.mrf.mxu0
    %v746 = vadd.f32 %v716, %v745
    %747 = vdwg.mxu0
    %748 = vmatpush.msra.mxu0 0.0
    %749 = vmatpush.msra.mxu0 0.0
    %750 = vmatpush.msra.mxu0 0.0
    %751 = vmatpush.msra.mxu0 0.0
    %752 = vmatpush.msra.mxu0 0.0
    %753 = vmatpush.msra.mxu0 0.0
    %754 = vmatpush.msra.mxu0 0.0
    %755 = vmatpush.msra.mxu0 0.0
    %756 = vmatpush.msra.mxu0 0.0
    %757 = vmatpush.msra.mxu0 0.0
    %758 = vmatpush.msra.mxu0 0.0
    %759 = vmatpush.msra.mxu0 0.0
    %v760 = vand.u32 %v636, 4294901760
    %761 = vmatpush.msra.mxu0 %v760
    %v762 = vand.u32 %v635, 4294901760
    %763 = vmatpush.msra.mxu0 %v762
    %v764 = vand.u32 %v634, 4294901760
    %765 = vmatpush.msra.mxu0 %v764
    %v766 = vand.u32 %v633, 4294901760
    %767 = vmatpush.msra.mxu0 %v766
    %v768 = vand.u32 %v646, 4294901760
    %v769 = vsub.f32 %v646, %v768
    %v770 = vand.u32 %v769, 4294901760
    %771 = vmatmul.f32.gmra.mxu0 %v770
    %v772 = vpop.f32.mrf.mxu0
    %v773 = vadd.f32 %v746, %v772
    %774 = vdwg.mxu0
    %775 = vmatpush.msra.mxu0 0.0
    %776 = vmatpush.msra.mxu0 0.0
    %777 = vmatpush.msra.mxu0 0.0
    %778 = vmatpush.msra.mxu0 0.0
    %779 = vmatpush.msra.mxu0 0.0
    %780 = vmatpush.msra.mxu0 0.0
    %781 = vmatpush.msra.mxu0 0.0
    %782 = vmatpush.msra.mxu0 0.0
    %783 = vmatpush.msra.mxu0 0.0
    %784 = vmatpush.msra.mxu0 0.0
    %785 = vmatpush.msra.mxu0 0.0
    %786 = vmatpush.msra.mxu0 0.0
    %v787 = vand.u32 %v636, 4294901760
    %v788 = vsub.f32 %v636, %v787
    %v789 = vand.u32 %v788, 4294901760
    %790 = vmatpush.msra.mxu0 %v789
    %v791 = vand.u32 %v635, 4294901760
    %v792 = vsub.f32 %v635, %v791
    %v793 = vand.u32 %v792, 4294901760
    %794 = vmatpush.msra.mxu0 %v793
    %v795 = vand.u32 %v634, 4294901760
    %v796 = vsub.f32 %v634, %v795
    %v797 = vand.u32 %v796, 4294901760
    %798 = vmatpush.msra.mxu0 %v797
    %v799 = vand.u32 %v633, 4294901760
    %v800 = vsub.f32 %v633, %v799
    %v801 = vand.u32 %v800, 4294901760
    %802 = vmatpush.msra.mxu0 %v801
    %v803 = vand.u32 %v646, 4294901760
    %804 = vmatmul.f32.gmra.mxu0 %v803
    %v805 = vpop.f32.mrf.mxu0
    %v806 = vadd.f32 %v773, %v805
    %807 = vdwg.mxu0
    %808 = vmatpush.msra.mxu0 0.0
    %809 = vmatpush.msra.mxu0 0.0
    %810 = vmatpush.msra.mxu0 0.0
    %811 = vmatpush.msra.mxu0 0.0
    %812 = vmatpush.msra.mxu0 0.0
    %813 = vmatpush.msra.mxu0 0.0
    %814 = vmatpush.msra.mxu0 0.0
    %815 = vmatpush.msra.mxu0 0.0
    %816 = vmatpush.msra.mxu0 0.0
    %817 = vmatpush.msra.mxu0 0.0
    %818 = vmatpush.msra.mxu0 0.0
    %819 = vmatpush.msra.mxu0 0.0
    %v820 = vand.u32 %v636, 4294901760
    %821 = vmatpush.msra.mxu0 %v820
    %v822 = vand.u32 %v635, 4294901760
    %823 = vmatpush.msra.mxu0 %v822
    %v824 = vand.u32 %v634, 4294901760
    %825 = vmatpush.msra.mxu0 %v824
    %v826 = vand.u32 %v633, 4294901760
    %827 = vmatpush.msra.mxu0 %v826
    %v828 = vand.u32 %v646, 4294901760
    %829 = vmatmul.f32.gmra.mxu0 %v828
    %v830 = vpop.f32.mrf.mxu0
    %v831 = vadd.f32 %v806, %v830
    %832 = vdwg.mxu0
    %v833 = vtanh.pop %v831
    %834 = vst [vmem:[#allocation3] sm:$0x1] %v833
    // Predicated region
    $region30: #{tpu_custom_call.1} parent=1 // pred_check
      _
    $region31: #{tpu_custom_call.1} parent=1 // pred_check_branch
      %836 = sbr.rel (0) target = $region33
    $region32: #{tpu_custom_call.1} parent=1 // pred_region
      %838 = vsyncadd [#allocation4], 0
      %s840 = sshll.u32 [#allocation3], 4
      %s841 = int_to_ptr.vmem [resolvable:$true] %s840
      %s842 = sshll.u32 %s7, 4
      %s843 = int_to_ptr.hbm [resolvable:$true] %s842
      %845 = dma.vmem_to_hbm [thread:$0]  %s841, 16, %s843, [#allocation4]
    $region33: #{tpu_custom_call.1} parent=1 // pred_fallthru
      _
    // Predicated region
    $region34: #{tpu_custom_call.1} parent=1 // pred_check
      _
    $region35: #{tpu_custom_call.1} parent=1 // pred_check_branch
      %847 = sbr.rel (0) target = $region37
    $region36: #{tpu_custom_call.1} parent=1 // pred_region
      %849 = dma.done [#allocation4], 16
    $region37: #{tpu_custom_call.1} parent=1 // pred_fallthru
      _
    %850 = vsyncpa [#allocation4], 1

</llo_original>
